<compile_context>
chip_gen: v7x
topology: tpu7x:2x2x1
jax: 0.10.0
libtpu: 0.0.40
codegen_flags: <defaults>
</compile_context>

<pallas_src>
import jax
import jax.numpy as jnp
from jax.experimental import pallas as pl
from jax.experimental.pallas import tpu as pltpu

NEG_SLOPE = 0.01   # nn.LeakyReLU() default negative_slope
LANE = 128         # TPU lane width


def _round_up(n, m):
    return ((n + m - 1) // m) * m


def _leaky_relu(v):
    # max(v, slope*v) == LeakyReLU for 0 < slope < 1; one fewer VALU op than where().
    return jnp.maximum(v, NEG_SLOPE * v)


# ----------------------------------------------------------------------------
# Kernel: one batch tile (TB rows) through all 4 layers, everything in VMEM.
# Hidden dims are lane-padded to 128; the final layer is action_count wide.
# ----------------------------------------------------------------------------
def dqn_kernel(x_ref,
               w1_ref, b1_ref,
               w2_ref, b2_ref,
               w3_ref, b3_ref,
               w4_ref, b4_ref,
               o_ref):
    cdt = w1_ref.dtype   # f32 (exact) or bf16 (optional fast path); acc stays f32

    h = jnp.dot(x_ref[...].astype(cdt), w1_ref[...],
                preferred_element_type=jnp.float32) + b1_ref[...]
    h = _leaky_relu(h)

    h = jnp.dot(h.astype(cdt), w2_ref[...],
                preferred_element_type=jnp.float32) + b2_ref[...]
    h = _leaky_relu(h)

    h = jnp.dot(h.astype(cdt), w3_ref[...],
                preferred_element_type=jnp.float32) + b3_ref[...]
    h = _leaky_relu(h)

    out = jnp.dot(h.astype(cdt), w4_ref[...],
                  preferred_element_type=jnp.float32) + b4_ref[...]
    o_ref[...] = out.astype(o_ref.dtype)


# ----------------------------------------------------------------------------
# Parameter prep: zero-pad hidden dims to 128 lanes (done once, outside the
# hot path).  Weights stored as (in_features, out_features) == torch weight.T;
# biases as (1, out_features).  The action dim is NOT padded.
# ----------------------------------------------------------------------------
def pad_params(params, obs_count, action_count, hidden=20, use_bf16=False):
    hp = _round_up(hidden, LANE)
    wdt = jnp.bfloat16 if use_bf16 else jnp.float32   # bf16 = numerics deviation

    def pad2(a, rows, cols, dt=jnp.float32):
        r, c = a.shape
        return jnp.pad(a, ((0, rows - r), (0, cols - c))).astype(dt)

    return {
        "w1": pad2(params["w1"], obs_count, hp, wdt), "b1": pad2(params["b1"], 1, hp),
        "w2": pad2(params["w2"], hp, hp, wdt),        "b2": pad2(params["b2"], 1, hp),
        "w3": pad2(params["w3"], hp, hp, wdt),        "b3": pad2(params["b3"], 1, hp),
        "w4": pad2(params["w4"], hp, action_count, wdt),
        "b4": pad2(params["b4"], 1, action_count),
    }


# ----------------------------------------------------------------------------
# Wrapper: batch-tiled pallas_call; weights resident in VMEM across grid steps.
# ----------------------------------------------------------------------------
def dqn_forward(x, padded_params, *, tb=2048):
    """x: (B, obs_count) f32; padded_params from pad_params(); returns (B, action_count)."""
    B, F = x.shape
    Hp = padded_params["w1"].shape[1]        # lane-padded hidden dim (128)
    A = padded_params["w4"].shape[1]         # action_count (unpadded)

    # Batch tile: multiple of 8, <= tb, and capped at ~B/2 so the grid has at
    # least 2 steps for large batches (v7x dual-TensorCore sharding of the
    # "parallel" batch axis).
    tb = _round_up(max(tb, 8), 8)
    TB = min(tb, _round_up(max((B + 1) // 2, 8), 8))
    grid_n = pl.cdiv(B, TB)
    B_pad = grid_n * TB
    if B_pad != B:
        x = jnp.pad(x, ((0, B_pad - B), (0, 0)))

    # Weights/biases: constant index_map -> loaded once, VMEM-resident.
    def wspec(a):
        return pl.BlockSpec(a.shape, lambda i: (0, 0))

    args = (x,
            padded_params["w1"], padded_params["b1"],
            padded_params["w2"], padded_params["b2"],
            padded_params["w3"], padded_params["b3"],
            padded_params["w4"], padded_params["b4"])

    flops = 2 * B_pad * (F * Hp + Hp * Hp + Hp * Hp + Hp * A)
    weight_bytes = sum(int(v.size) * v.dtype.itemsize
                       for k, v in padded_params.items())
    bytes_accessed = (int(x.size) * x.dtype.itemsize
                      + B_pad * A * 4
                      + weight_bytes)

    out = pl.pallas_call(
        dqn_kernel,
        out_shape=jax.ShapeDtypeStruct((B_pad, A), jnp.float32),
        grid=(grid_n,),
        in_specs=[pl.BlockSpec((TB, F), lambda i: (i, 0))]
                 + [wspec(a) for a in args[1:]],
        out_specs=pl.BlockSpec((TB, A), lambda i: (i, 0)),
        compiler_params=pltpu.CompilerParams(
            dimension_semantics=("parallel",)),
        cost_estimate=pl.CostEstimate(flops=int(flops),
                                      transcendentals=0,
                                      bytes_accessed=int(bytes_accessed)),
    )(*args)

    return out[:B]   # drop batch padding only; output width is already action_count


# ----------------------------------------------------------------------------
# Init + pure-JAX reference
# ----------------------------------------------------------------------------
def init_params(key, obs_count, action_count, hidden=20):
    """Deterministic init mimicking nn.Linear (uniform +-1/sqrt(fan_in))."""
    dims = [(obs_count, hidden), (hidden, hidden), (hidden, hidden),
            (hidden, action_count)]
    params = {}
    for i, (fan_in, fan_out) in enumerate(dims, start=1):
        key, kw, kb = jax.random.split(key, 3)
        bound = 1.0 / jnp.sqrt(jnp.float32(fan_in))
        params[f"w{i}"] = jax.random.uniform(
            kw, (fan_in, fan_out), jnp.float32, -bound, bound)
        params[f"b{i}"] = jax.random.uniform(
            kb, (1, fan_out), jnp.float32, -bound, bound)
    return params


def reference_forward(x, params):
    h = _leaky_relu(x @ params["w1"] + params["b1"])
    h = _leaky_relu(h @ params["w2"] + params["b2"])
    h = _leaky_relu(h @ params["w3"] + params["b3"])
    return h @ params["w4"] + params["b4"]


if __name__ == "__main__":
    obs_count = 16
    action_count = 4
    batch = 64          # small but enough to exercise multiple grid steps

    key = jax.random.PRNGKey(0)
    key, kx = jax.random.split(key)
    x = jax.random.normal(kx, (batch, obs_count), jnp.float32)

    params = init_params(key, obs_count, action_count)
    padded = pad_params(params, obs_count, action_count)   # exact f32 path

    # tb=32 -> grid of 2 batch tiles (production would keep the default tb=2048).
    out = dqn_forward(x, padded, tb=32)
    out = jax.block_until_ready(out)

    ref = reference_forward(x, params)
    assert out.shape == (batch, action_count)
    assert jnp.allclose(out, ref, atol=1e-4, rtol=1e-4), "mismatch vs reference"

    print("KERNEL_OK")
</pallas_src>

<mosaic_0001>
module attributes {stable_mosaic.version = 11 : i64} {
  func.func @dqn_kernel(%arg0: i32, %arg1: memref<32x16xf32, #tpu.memory_space<vmem>>, %arg2: memref<16x128xf32, #tpu.memory_space<vmem>>, %arg3: memref<1x128xf32, #tpu.memory_space<vmem>>, %arg4: memref<128x128xf32, #tpu.memory_space<vmem>>, %arg5: memref<1x128xf32, #tpu.memory_space<vmem>>, %arg6: memref<128x128xf32, #tpu.memory_space<vmem>>, %arg7: memref<1x128xf32, #tpu.memory_space<vmem>>, %arg8: memref<128x4xf32, #tpu.memory_space<vmem>>, %arg9: memref<1x4xf32, #tpu.memory_space<vmem>>, %arg10: memref<32x4xf32, #tpu.memory_space<vmem>>) attributes {dimension_semantics = [#tpu.dimension_semantics<parallel>], iteration_bounds = array<i64: 2>, scalar_prefetch = 0 : i64, scratch_operands = 0 : i64, tpu.core_type = #tpu.core_type<tc>, window_params = [{transform_indices = @transform_0, window_bounds = array<i64: 32, 16>}, {pipeline_mode = #tpu.pipeline_mode<synchronous>, transform_indices = @transform_1, window_bounds = array<i64: 16, 128>}, {pipeline_mode = #tpu.pipeline_mode<synchronous>, transform_indices = @transform_2, window_bounds = array<i64: 1, 128>}, {pipeline_mode = #tpu.pipeline_mode<synchronous>, transform_indices = @transform_3, window_bounds = array<i64: 128, 128>}, {pipeline_mode = #tpu.pipeline_mode<synchronous>, transform_indices = @transform_4, window_bounds = array<i64: 1, 128>}, {pipeline_mode = #tpu.pipeline_mode<synchronous>, transform_indices = @transform_5, window_bounds = array<i64: 128, 128>}, {pipeline_mode = #tpu.pipeline_mode<synchronous>, transform_indices = @transform_6, window_bounds = array<i64: 1, 128>}, {pipeline_mode = #tpu.pipeline_mode<synchronous>, transform_indices = @transform_7, window_bounds = array<i64: 128, 4>}, {pipeline_mode = #tpu.pipeline_mode<synchronous>, transform_indices = @transform_8, window_bounds = array<i64: 1, 4>}, {transform_indices = @transform_9, window_bounds = array<i64: 32, 4>}]} {
    %c0 = arith.constant 0 : index
    %c0_0 = arith.constant 0 : index
    %0 = vector.load %arg1[%c0, %c0_0] : memref<32x16xf32, #tpu.memory_space<vmem>>, vector<32x16xf32>
    %c0_1 = arith.constant 0 : index
    %c0_2 = arith.constant 0 : index
    %1 = vector.load %arg2[%c0_1, %c0_2] : memref<16x128xf32, #tpu.memory_space<vmem>>, vector<16x128xf32>
    %cst = arith.constant dense<0.000000e+00> : vector<32x128xf32>
    %2 = tpu.matmul %0, %1, %cst {dimension_numbers = #tpu.dot_dimension_numbers<[1], [0], [0], [1], [0, 0, 1, 1], [], []>} : vector<32x16xf32>, vector<16x128xf32>, vector<32x128xf32> -> vector<32x128xf32>
    %c0_3 = arith.constant 0 : index
    %c0_4 = arith.constant 0 : index
    %3 = vector.load %arg3[%c0_3, %c0_4] : memref<1x128xf32, #tpu.memory_space<vmem>>, vector<1x128xf32>
    %4 = vector.broadcast %3 : vector<1x128xf32> to vector<32x128xf32>
    %5 = arith.addf %2, %4 : vector<32x128xf32>
    %cst_5 = arith.constant 0.00999999977 : f32
    %6 = vector.broadcast %cst_5 : f32 to vector<32x128xf32>
    %7 = arith.mulf %6, %5 : vector<32x128xf32>
    %8 = arith.maximumf %5, %7 : vector<32x128xf32>
    %c0_6 = arith.constant 0 : index
    %c0_7 = arith.constant 0 : index
    %9 = vector.load %arg4[%c0_6, %c0_7] : memref<128x128xf32, #tpu.memory_space<vmem>>, vector<128x128xf32>
    %cst_8 = arith.constant dense<0.000000e+00> : vector<32x128xf32>
    %10 = tpu.matmul %8, %9, %cst_8 {dimension_numbers = #tpu.dot_dimension_numbers<[1], [0], [0], [1], [0, 0, 1, 1], [], []>} : vector<32x128xf32>, vector<128x128xf32>, vector<32x128xf32> -> vector<32x128xf32>
    %c0_9 = arith.constant 0 : index
    %c0_10 = arith.constant 0 : index
    %11 = vector.load %arg5[%c0_9, %c0_10] : memref<1x128xf32, #tpu.memory_space<vmem>>, vector<1x128xf32>
    %12 = vector.broadcast %11 : vector<1x128xf32> to vector<32x128xf32>
    %13 = arith.addf %10, %12 : vector<32x128xf32>
    %cst_11 = arith.constant 0.00999999977 : f32
    %14 = vector.broadcast %cst_11 : f32 to vector<32x128xf32>
    %15 = arith.mulf %14, %13 : vector<32x128xf32>
    %16 = arith.maximumf %13, %15 : vector<32x128xf32>
    %c0_12 = arith.constant 0 : index
    %c0_13 = arith.constant 0 : index
    %17 = vector.load %arg6[%c0_12, %c0_13] : memref<128x128xf32, #tpu.memory_space<vmem>>, vector<128x128xf32>
    %cst_14 = arith.constant dense<0.000000e+00> : vector<32x128xf32>
    %18 = tpu.matmul %16, %17, %cst_14 {dimension_numbers = #tpu.dot_dimension_numbers<[1], [0], [0], [1], [0, 0, 1, 1], [], []>} : vector<32x128xf32>, vector<128x128xf32>, vector<32x128xf32> -> vector<32x128xf32>
    %c0_15 = arith.constant 0 : index
    %c0_16 = arith.constant 0 : index
    %19 = vector.load %arg7[%c0_15, %c0_16] : memref<1x128xf32, #tpu.memory_space<vmem>>, vector<1x128xf32>
    %20 = vector.broadcast %19 : vector<1x128xf32> to vector<32x128xf32>
    %21 = arith.addf %18, %20 : vector<32x128xf32>
    %cst_17 = arith.constant 0.00999999977 : f32
    %22 = vector.broadcast %cst_17 : f32 to vector<32x128xf32>
    %23 = arith.mulf %22, %21 : vector<32x128xf32>
    %24 = arith.maximumf %21, %23 : vector<32x128xf32>
    %c0_18 = arith.constant 0 : index
    %c0_19 = arith.constant 0 : index
    %25 = vector.load %arg8[%c0_18, %c0_19] : memref<128x4xf32, #tpu.memory_space<vmem>>, vector<128x4xf32>
    %cst_20 = arith.constant dense<0.000000e+00> : vector<32x4xf32>
    %26 = tpu.matmul %24, %25, %cst_20 {dimension_numbers = #tpu.dot_dimension_numbers<[1], [0], [0], [1], [0, 0, 1, 1], [], []>} : vector<32x128xf32>, vector<128x4xf32>, vector<32x4xf32> -> vector<32x4xf32>
    %c0_21 = arith.constant 0 : index
    %c0_22 = arith.constant 0 : index
    %27 = vector.load %arg9[%c0_21, %c0_22] : memref<1x4xf32, #tpu.memory_space<vmem>>, vector<1x4xf32>
    %28 = vector.broadcast %27 : vector<1x4xf32> to vector<32x4xf32>
    %29 = arith.addf %26, %28 : vector<32x4xf32>
    %c0_23 = arith.constant 0 : index
    %c0_24 = arith.constant 0 : index
    %30 = vector.load %arg10[%c0_23, %c0_24] : memref<32x4xf32, #tpu.memory_space<vmem>>, vector<32x4xf32>
    tpu.vector_store %arg10[%c0_23, %c0_24], %29 {strides = array<i32>} : memref<32x4xf32, #tpu.memory_space<vmem>>, vector<32x4xf32>,
    return
  }
  func.func @transform_0(%arg0: i32) -> (i32, i32) {
    %c0_i32 = arith.constant 0 : i32
    %c0_i32_0 = arith.constant 0 : i32
    return %arg0, %c0_i32 : i32, i32
  }
  func.func @transform_1(%arg0: i32) -> (i32, i32) {
    %c0_i32 = arith.constant 0 : i32
    %c0_i32_0 = arith.constant 0 : i32
    %c0_i32_1 = arith.constant 0 : i32
    return %c0_i32, %c0_i32_0 : i32, i32
  }
  func.func @transform_2(%arg0: i32) -> (i32, i32) {
    %c0_i32 = arith.constant 0 : i32
    %c0_i32_0 = arith.constant 0 : i32
    %c0_i32_1 = arith.constant 0 : i32
    return %c0_i32, %c0_i32_0 : i32, i32
  }
  func.func @transform_3(%arg0: i32) -> (i32, i32) {
    %c0_i32 = arith.constant 0 : i32
    %c0_i32_0 = arith.constant 0 : i32
    %c0_i32_1 = arith.constant 0 : i32
    return %c0_i32, %c0_i32_0 : i32, i32
  }
  func.func @transform_4(%arg0: i32) -> (i32, i32) {
    %c0_i32 = arith.constant 0 : i32
    %c0_i32_0 = arith.constant 0 : i32
    %c0_i32_1 = arith.constant 0 : i32
    return %c0_i32, %c0_i32_0 : i32, i32
  }
  func.func @transform_5(%arg0: i32) -> (i32, i32) {
    %c0_i32 = arith.constant 0 : i32
    %c0_i32_0 = arith.constant 0 : i32
    %c0_i32_1 = arith.constant 0 : i32
    return %c0_i32, %c0_i32_0 : i32, i32
  }
  func.func @transform_6(%arg0: i32) -> (i32, i32) {
    %c0_i32 = arith.constant 0 : i32
    %c0_i32_0 = arith.constant 0 : i32
    %c0_i32_1 = arith.constant 0 : i32
    return %c0_i32, %c0_i32_0 : i32, i32
  }
  func.func @transform_7(%arg0: i32) -> (i32, i32) {
    %c0_i32 = arith.constant 0 : i32
    %c0_i32_0 = arith.constant 0 : i32
    %c0_i32_1 = arith.constant 0 : i32
    return %c0_i32, %c0_i32_0 : i32, i32
  }
  func.func @transform_8(%arg0: i32) -> (i32, i32) {
    %c0_i32 = arith.constant 0 : i32
    %c0_i32_0 = arith.constant 0 : i32
    %c0_i32_1 = arith.constant 0 : i32
    return %c0_i32, %c0_i32_0 : i32, i32
  }
  func.func @transform_9(%arg0: i32) -> (i32, i32) {
    %c0_i32 = arith.constant 0 : i32
    %c0_i32_0 = arith.constant 0 : i32
    return %arg0, %c0_i32 : i32, i32
  }
}

</mosaic_0001>

<llo_original>
// kernel: tpu_custom_call.1
$region0: #{tpu_custom_call.1}
  #allocation0 [shape = 'u32[]', space=smem, size = 0x4, offset = 0x4, fixed_abs, tag = 'smem constant byte address 0x4 - core index']
  #allocation1 [shape = 'u32[144,128]{1,0:T(1,128)}', space=vmem, size = 0x12000, scoped, tag = 'internal scratch']
  %s0 = inlined_call_operand.vmem [shape: f32[64,16], index: 0, kind: input, shape index: {}]
  %s1 = inlined_call_operand.vmem [shape: f32[16,128], index: 1, kind: input, shape index: {}]
  %s2 = inlined_call_operand.vmem [shape: f32[1,128], index: 2, kind: input, shape index: {}]
  %s3 = inlined_call_operand.vmem [shape: f32[128,128], index: 3, kind: input, shape index: {}]
  %s4 = inlined_call_operand.vmem [shape: f32[1,128], index: 4, kind: input, shape index: {}]
  %s5 = inlined_call_operand.hbm [shape: f32[128,128], index: 5, kind: input, shape index: {}]
  %s6 = inlined_call_operand.vmem [shape: f32[1,128], index: 6, kind: input, shape index: {}]
  %s7 = inlined_call_operand.vmem [shape: f32[128,4], index: 7, kind: input, shape index: {}]
  %s8 = inlined_call_operand.vmem [shape: f32[1,4], index: 8, kind: input, shape index: {}]
  %s9 = inlined_call_operand.vmem [shape: f32[64,4], index: 9, kind: output, shape index: {}]
  %s10 = sld [smem:[#allocation0]]
  $region73: #{tpu_custom_call.1} parent=0
    _
  %s12 = ssub.s32 1, %s10
  %s13 = scalar_select 0, %s12, %s10
  $region1: #{tpu_custom_call.1} parent=0
    #allocation2 [shape = 'u8[65536]{0}', space=vmem, size = 0x10000, scoped, tag = 'input window, operand 5, single buffered']
    #allocation3 [shape = 's32[2]{0}', space=sflag, size = 0x8, scoped, tag = 'scoped memory for tpu_custom_call.1']
    %14 = vsyncpa [#allocation3], 0
    loop: start=0, step=1, limit=4
    $region2: #{tpu_custom_call.1} parent=1 // loop_pre_header
      _
    $region3: #{tpu_custom_call.1} parent=1 // loop_header
      %s16 = sphi 0, %s20
      %p17 = scmp.ge.s32.totalorder %s16, 4
      %s26 = sphi 0, %s28
      %s29 = sphi 0, %s26
      %s30 = sphi 0, %s29
      %s46 = sphi 0, %s30
      %s50 = sphi 0, %s50
      %s52 = sphi 0, %s50
      %s53 = sphi 0, %s52
      %s67 = sphi 0, %s53
      %s71 = sphi 0, %s71
      %s73 = sphi 0, %s71
      %s74 = sphi 0, %s73
      %s88 = sphi 0, %s74
      %s92 = sphi 0, %s92
      %s94 = sphi 0, %s92
      %s95 = sphi 0, %s94
      %s109 = sphi 0, %s95
      %s113 = sphi 0, %s113
      %s115 = sphi 0, %s113
      %s116 = sphi 0, %s115
      %s130 = sphi 0, %s116
      %s134 = sphi 0, %s134
      %s136 = sphi 0, %s134
      %s137 = sphi 0, %s136
      %s151 = sphi 0, %s137
      %s155 = sphi 0, %s155
      %s157 = sphi 0, %s155
      %s158 = sphi 0, %s157
      %s172 = sphi 0, %s158
      %s176 = sphi 0, %s176
      %s178 = sphi 0, %s176
      %s179 = sphi 0, %s178
      %s193 = sphi 0, %s179
      %s197 = sphi 0, %s197
      %s199 = sphi 0, %s197
      %s200 = sphi 0, %s199
      %s214 = sphi 0, %s200
      %s220 = sphi 0, %s222
      %s223 = sphi 0, %s220
      %s224 = sphi 0, %s223
      %s240 = sphi 0, %s224
    $region4: #{tpu_custom_call.1} parent=1 // loop_header_branch
      %19 = sbr.rel (%p17) target = $region8
    $region5: #{tpu_custom_call.1} parent=1 // loop_body
      %s21 = ssub.s32 %s16, 1
      %s22 = ssub.s32 %s16, 2
      %s23 = sadd.s32 %s16, 1
      %s24 = ssub.s32 %s16, %s23
      %p25 = scmp.eq.s32.totalorder %s24, 0
      %s27 = sadd.s32 %s26, 1
      %s28 = scalar_select %p25, %s26, %s27
      %p31 = pneg %p25
      %p32 = scmp.eq.s32.totalorder %s16, 1
      %p33 = por %p31, %p32
      %p34 = scmp.ne.s32.totalorder %s26, %s29
      %p35 = scmp.eq.s32.totalorder %s16, 0
      %p36 = por %p34, %p35
      %p37 = scmp.ne.s32.totalorder %s26, %s29
      %p38 = scmp.eq.s32.totalorder %s21, 1
      %p39 = por %p37, %p38
      %p40 = scmp.ne.s32.totalorder %s29, %s30
      %p41 = scmp.eq.s32.totalorder %s21, 0
      %p42 = por %p40, %p41
      %p43 = scmp.ne.s32.totalorder %s29, %s30
      %p44 = scmp.eq.s32.totalorder %s22, 1
      %p45 = por %p43, %p44
      %p47 = scmp.ne.s32.totalorder %s30, %s46
      %p48 = scmp.eq.s32.totalorder %s22, 0
      %p49 = por %p47, %p48
      %s51 = sadd.s32 %s50, 1
      %p54 = scmp.eq.s32.totalorder %s16, 1
      %p55 = scmp.ne.s32.totalorder %s50, %s52
      %p56 = scmp.eq.s32.totalorder %s16, 0
      %p57 = por %p55, %p56
      %p58 = scmp.ne.s32.totalorder %s50, %s52
      %p59 = scmp.eq.s32.totalorder %s21, 1
      %p60 = por %p58, %p59
      %p61 = scmp.ne.s32.totalorder %s52, %s53
      %p62 = scmp.eq.s32.totalorder %s21, 0
      %p63 = por %p61, %p62
      %p64 = scmp.ne.s32.totalorder %s52, %s53
      %p65 = scmp.eq.s32.totalorder %s22, 1
      %p66 = por %p64, %p65
      %p68 = scmp.ne.s32.totalorder %s53, %s67
      %p69 = scmp.eq.s32.totalorder %s22, 0
      %p70 = por %p68, %p69
      %s72 = sadd.s32 %s71, 1
      %p75 = scmp.eq.s32.totalorder %s16, 1
      %p76 = scmp.ne.s32.totalorder %s71, %s73
      %p77 = scmp.eq.s32.totalorder %s16, 0
      %p78 = por %p76, %p77
      %p79 = scmp.ne.s32.totalorder %s71, %s73
      %p80 = scmp.eq.s32.totalorder %s21, 1
      %p81 = por %p79, %p80
      %p82 = scmp.ne.s32.totalorder %s73, %s74
      %p83 = scmp.eq.s32.totalorder %s21, 0
      %p84 = por %p82, %p83
      %p85 = scmp.ne.s32.totalorder %s73, %s74
      %p86 = scmp.eq.s32.totalorder %s22, 1
      %p87 = por %p85, %p86
      %p89 = scmp.ne.s32.totalorder %s74, %s88
      %p90 = scmp.eq.s32.totalorder %s22, 0
      %p91 = por %p89, %p90
      %s93 = sadd.s32 %s92, 1
      %p96 = scmp.eq.s32.totalorder %s16, 1
      %p97 = scmp.ne.s32.totalorder %s92, %s94
      %p98 = scmp.eq.s32.totalorder %s16, 0
      %p99 = por %p97, %p98
      %p100 = scmp.ne.s32.totalorder %s92, %s94
      %p101 = scmp.eq.s32.totalorder %s21, 1
      %p102 = por %p100, %p101
      %p103 = scmp.ne.s32.totalorder %s94, %s95
      %p104 = scmp.eq.s32.totalorder %s21, 0
      %p105 = por %p103, %p104
      %p106 = scmp.ne.s32.totalorder %s94, %s95
      %p107 = scmp.eq.s32.totalorder %s22, 1
      %p108 = por %p106, %p107
      %p110 = scmp.ne.s32.totalorder %s95, %s109
      %p111 = scmp.eq.s32.totalorder %s22, 0
      %p112 = por %p110, %p111
      %s114 = sadd.s32 %s113, 1
      %p117 = scmp.eq.s32.totalorder %s16, 1
      %p118 = scmp.ne.s32.totalorder %s113, %s115
      %p119 = scmp.eq.s32.totalorder %s16, 0
      %p120 = por %p118, %p119
      %p121 = scmp.ne.s32.totalorder %s113, %s115
      %p122 = scmp.eq.s32.totalorder %s21, 1
      %p123 = por %p121, %p122
      %p124 = scmp.ne.s32.totalorder %s115, %s116
      %p125 = scmp.eq.s32.totalorder %s21, 0
      %p126 = por %p124, %p125
      %p127 = scmp.ne.s32.totalorder %s115, %s116
      %p128 = scmp.eq.s32.totalorder %s22, 1
      %p129 = por %p127, %p128
      %p131 = scmp.ne.s32.totalorder %s116, %s130
      %p132 = scmp.eq.s32.totalorder %s22, 0
      %p133 = por %p131, %p132
      %s135 = sadd.s32 %s134, 1
      %p138 = scmp.eq.s32.totalorder %s16, 1
      %p139 = scmp.ne.s32.totalorder %s134, %s136
      %p140 = scmp.eq.s32.totalorder %s16, 0
      %p141 = por %p139, %p140
      %p142 = scmp.ne.s32.totalorder %s134, %s136
      %p143 = scmp.eq.s32.totalorder %s21, 1
      %p144 = por %p142, %p143
      %p145 = scmp.ne.s32.totalorder %s136, %s137
      %p146 = scmp.eq.s32.totalorder %s21, 0
      %p147 = por %p145, %p146
      %p148 = scmp.ne.s32.totalorder %s136, %s137
      %p149 = scmp.eq.s32.totalorder %s22, 1
      %p150 = por %p148, %p149
      %p152 = scmp.ne.s32.totalorder %s137, %s151
      %p153 = scmp.eq.s32.totalorder %s22, 0
      %p154 = por %p152, %p153
      %s156 = sadd.s32 %s155, 1
      %p159 = scmp.eq.s32.totalorder %s16, 1
      %p160 = scmp.ne.s32.totalorder %s155, %s157
      %p161 = scmp.eq.s32.totalorder %s16, 0
      %p162 = por %p160, %p161
      %p163 = scmp.ne.s32.totalorder %s155, %s157
      %p164 = scmp.eq.s32.totalorder %s21, 1
      %p165 = por %p163, %p164
      %p166 = scmp.ne.s32.totalorder %s157, %s158
      %p167 = scmp.eq.s32.totalorder %s21, 0
      %p168 = por %p166, %p167
      %p169 = scmp.ne.s32.totalorder %s157, %s158
      %p170 = scmp.eq.s32.totalorder %s22, 1
      %p171 = por %p169, %p170
      %p173 = scmp.ne.s32.totalorder %s158, %s172
      %p174 = scmp.eq.s32.totalorder %s22, 0
      %p175 = por %p173, %p174
      %s177 = sadd.s32 %s176, 1
      %p180 = scmp.eq.s32.totalorder %s16, 1
      %p181 = scmp.ne.s32.totalorder %s176, %s178
      %p182 = scmp.eq.s32.totalorder %s16, 0
      %p183 = por %p181, %p182
      %p184 = scmp.ne.s32.totalorder %s176, %s178
      %p185 = scmp.eq.s32.totalorder %s21, 1
      %p186 = por %p184, %p185
      %p187 = scmp.ne.s32.totalorder %s178, %s179
      %p188 = scmp.eq.s32.totalorder %s21, 0
      %p189 = por %p187, %p188
      %p190 = scmp.ne.s32.totalorder %s178, %s179
      %p191 = scmp.eq.s32.totalorder %s22, 1
      %p192 = por %p190, %p191
      %p194 = scmp.ne.s32.totalorder %s179, %s193
      %p195 = scmp.eq.s32.totalorder %s22, 0
      %p196 = por %p194, %p195
      %s198 = sadd.s32 %s197, 1
      %p201 = scmp.eq.s32.totalorder %s16, 1
      %p202 = scmp.ne.s32.totalorder %s197, %s199
      %p203 = scmp.eq.s32.totalorder %s16, 0
      %p204 = por %p202, %p203
      %p205 = scmp.ne.s32.totalorder %s197, %s199
      %p206 = scmp.eq.s32.totalorder %s21, 1
      %p207 = por %p205, %p206
      %p208 = scmp.ne.s32.totalorder %s199, %s200
      %p209 = scmp.eq.s32.totalorder %s21, 0
      %p210 = por %p208, %p209
      %p211 = scmp.ne.s32.totalorder %s199, %s200
      %p212 = scmp.eq.s32.totalorder %s22, 1
      %p213 = por %p211, %p212
      %p215 = scmp.ne.s32.totalorder %s200, %s214
      %p216 = scmp.eq.s32.totalorder %s22, 0
      %p217 = por %p215, %p216
      %s218 = ssub.s32 %s16, %s23
      %p219 = scmp.eq.s32.totalorder %s218, 0
      %s221 = sadd.s32 %s220, 1
      %s222 = scalar_select %p219, %s220, %s221
      %p225 = pneg %p219
      %p226 = scmp.eq.s32.totalorder %s16, 1
      %p227 = por %p225, %p226
      %p228 = scmp.ne.s32.totalorder %s220, %s223
      %p229 = scmp.eq.s32.totalorder %s16, 0
      %p230 = por %p228, %p229
      %p231 = scmp.ne.s32.totalorder %s220, %s223
      %p232 = scmp.eq.s32.totalorder %s21, 1
      %p233 = por %p231, %p232
      %p234 = scmp.ne.s32.totalorder %s223, %s224
      %p235 = scmp.eq.s32.totalorder %s21, 0
      %p236 = por %p234, %p235
      %p237 = scmp.ne.s32.totalorder %s223, %s224
      %p238 = scmp.eq.s32.totalorder %s22, 1
      %p239 = por %p237, %p238
      %p241 = scmp.ne.s32.totalorder %s224, %s240
      %p242 = scmp.eq.s32.totalorder %s22, 0
      %p243 = por %p241, %p242
      %p244 = scmp.le.s32.totalorder 1, %s16
      %p245 = scmp.lt.s32.totalorder %s16, 3
      %p246 = pnand %p244, %p245
      %p247 = pneg %p246
      // Predicated region
      $region9: #{tpu_custom_call.1} parent=5 // pred_check
        _
      $region10: #{tpu_custom_call.1} parent=5 // pred_check_branch
        %249 = sbr.rel (%p246) target = $region12
      $region11: #{tpu_custom_call.1} parent=5 // pred_region
        %s250 = ssub.s32 %s16, 1
        // Predicated region
        $region13: #{tpu_custom_call.1} parent=11 // pred_check
          %p251 = pneg %p63
        $region14: #{tpu_custom_call.1} parent=11 // pred_check_branch
          %253 = sbr.rel (%p251) target = $region16
        $region15: #{tpu_custom_call.1} parent=11 // pred_region
          _
        $region16: #{tpu_custom_call.1} parent=11 // pred_fallthru
          _
        // Predicated region
        $region17: #{tpu_custom_call.1} parent=11 // pred_check
          %p254 = pneg %p84
        $region18: #{tpu_custom_call.1} parent=11 // pred_check_branch
          %256 = sbr.rel (%p254) target = $region20
        $region19: #{tpu_custom_call.1} parent=11 // pred_region
          _
        $region20: #{tpu_custom_call.1} parent=11 // pred_fallthru
          _
        // Predicated region
        $region21: #{tpu_custom_call.1} parent=11 // pred_check
          %p257 = pneg %p105
        $region22: #{tpu_custom_call.1} parent=11 // pred_check_branch
          %259 = sbr.rel (%p257) target = $region24
        $region23: #{tpu_custom_call.1} parent=11 // pred_region
          _
        $region24: #{tpu_custom_call.1} parent=11 // pred_fallthru
          _
        // Predicated region
        $region25: #{tpu_custom_call.1} parent=11 // pred_check
          %p260 = pneg %p126
        $region26: #{tpu_custom_call.1} parent=11 // pred_check_branch
          %262 = sbr.rel (%p260) target = $region28
        $region27: #{tpu_custom_call.1} parent=11 // pred_region
          _
        $region28: #{tpu_custom_call.1} parent=11 // pred_fallthru
          _
        // Predicated region
        $region29: #{tpu_custom_call.1} parent=11 // pred_check
          %p263 = pneg %p147
        $region30: #{tpu_custom_call.1} parent=11 // pred_check_branch
          %265 = sbr.rel (%p263) target = $region32
        $region31: #{tpu_custom_call.1} parent=11 // pred_region
          %s267 = ssub.s32 2048, 2048
          %268 = vsyncadd [#allocation3], %s267
          %s269 = sshll.u32 [#allocation2], 4
          %s270 = int_to_ptr.vmem [resolvable:$true] %s269
          %275 = dma.hbm_to_vmem [thread:$0]  %s5, 2048, %s270, [#allocation3], 128, 128, 8
        $region32: #{tpu_custom_call.1} parent=11 // pred_fallthru
          _
        // Predicated region
        $region33: #{tpu_custom_call.1} parent=11 // pred_check
          %p276 = pneg %p168
        $region34: #{tpu_custom_call.1} parent=11 // pred_check_branch
          %278 = sbr.rel (%p276) target = $region36
        $region35: #{tpu_custom_call.1} parent=11 // pred_region
          _
        $region36: #{tpu_custom_call.1} parent=11 // pred_fallthru
          _
        // Predicated region
        $region37: #{tpu_custom_call.1} parent=11 // pred_check
          %p279 = pneg %p189
        $region38: #{tpu_custom_call.1} parent=11 // pred_check_branch
          %281 = sbr.rel (%p279) target = $region40
        $region39: #{tpu_custom_call.1} parent=11 // pred_region
          _
        $region40: #{tpu_custom_call.1} parent=11 // pred_fallthru
          _
        // Predicated region
        $region41: #{tpu_custom_call.1} parent=11 // pred_check
          %p282 = pneg %p210
        $region42: #{tpu_custom_call.1} parent=11 // pred_check_branch
          %284 = sbr.rel (%p282) target = $region44
        $region43: #{tpu_custom_call.1} parent=11 // pred_region
          _
        $region44: #{tpu_custom_call.1} parent=11 // pred_fallthru
          _
      $region12: #{tpu_custom_call.1} parent=5 // pred_fallthru
        _
      %p285 = scmp.lt.s32.totalorder %s16, 2
      // Predicated region
      $region45: #{tpu_custom_call.1} parent=5 // pred_check
        %p286 = pneg %p285
      $region46: #{tpu_custom_call.1} parent=5 // pred_check_branch
        %288 = sbr.rel (%p286) target = $region48
      $region47: #{tpu_custom_call.1} parent=5 // pred_region
        // Predicated region
        $region49: #{tpu_custom_call.1} parent=47 // pred_check
          %p289 = pneg %p36
        $region50: #{tpu_custom_call.1} parent=47 // pred_check_branch
          %291 = sbr.rel (%p289) target = $region52
        $region51: #{tpu_custom_call.1} parent=47 // pred_region
          %s292 = smul.u32 4, %s16
          %p293 = scmp.lt.s32.totalorder %s292, 7
          %s294 = scalar_select %p293, %s292, 7
          %s295 = smul.addr %s294, 8
          %s296 = scalar_lea.vmem %s0, %s295
          %s297 = smul.u32 4, %s16
        $region52: #{tpu_custom_call.1} parent=47 // pred_fallthru
          _
      $region48: #{tpu_custom_call.1} parent=5 // pred_fallthru
        _
      %p298 = scmp.le.s32.totalorder 1, %s16
      %p299 = scmp.lt.s32.totalorder %s16, 3
      %p300 = pnand %p298, %p299
      %p301 = pneg %p300
      // Predicated region
      $region53: #{tpu_custom_call.1} parent=5 // pred_check
        _
      $region54: #{tpu_custom_call.1} parent=5 // pred_check_branch
        %303 = sbr.rel (%p300) target = $region56
      $region55: #{tpu_custom_call.1} parent=5 // pred_region
        %s304 = ssub.s32 %s16, 1
        // Predicated region
        $region57: #{tpu_custom_call.1} parent=55 // pred_check
          %p305 = pneg %p147
        $region58: #{tpu_custom_call.1} parent=55 // pred_check_branch
          %307 = sbr.rel (%p305) target = $region60
        $region59: #{tpu_custom_call.1} parent=55 // pred_region
          %308 = dma.done [#allocation3], 2048
        $region60: #{tpu_custom_call.1} parent=55 // pred_fallthru
          _
        %s309 = smul.u32 4, %s21
        %p310 = scmp.lt.s32.totalorder %s309, 7
        %s311 = scalar_select %p310, %s309, 7
        %s312 = smul.addr %s311, 8
        %s313 = scalar_lea.vmem %s0, %s312
        %p314 = pneg %p42
        %p315 = pneg %p39
        %p316 = pneg %p63
        %p317 = pneg %p60
        %p318 = pneg %p84
        %p319 = pneg %p81
        %p320 = pneg %p105
        %p321 = pneg %p102
        %p322 = pneg %p126
        %p323 = pneg %p123
        %p324 = pneg %p147
        %p325 = pneg %p144
        %p326 = pneg %p168
        %p327 = pneg %p165
        %p328 = pneg %p189
        %p329 = pneg %p186
        %p330 = pneg %p210
        %p331 = pneg %p207
        %p332 = pneg %p236
        %p333 = pneg %p233
        %s334 = smul.u32 4, %s21
        %p335 = scmp.lt.s32.totalorder %s334, 7
        %s336 = scalar_select %p335, %s334, 7
        %s337 = smul.addr %s336, 8
        %s338 = scalar_lea.vmem %s9, %s337
        %s339 = smul.u32 4, %s21
        %p340 = scmp.lt.s32.totalorder %s339, 7
        %s341 = scalar_select %p340, %s339, 7
        %s342 = smul.addr %s341, 8
        %s343 = scalar_lea.vmem %s0, %s342
        %s344 = smul.u32 4, %s21
        %s345 = smul.u32 4, %s21
        %p346 = scmp.lt.s32.totalorder %s345, 7
        %s347 = scalar_select %p346, %s345, 7
        %s348 = smul.addr %s347, 8
        %s349 = scalar_lea.vmem %s9, %s348
        %s350 = smul.u32 4, %s21
        %v351 = vld [vmem:[%s343] sm:$0xff]
        %v352 = vld [vmem:[%s343 + $0x8] sm:$0xff]
        %v353 = vld [vmem:[%s343 + $0x10] sm:$0xff]
        %v354 = vld [vmem:[%s343 + $0x18] sm:$0xff]
        %v355 = vld [vmem:[%s1] sm:$0xff]
        %v356 = vld [vmem:[%s1 + $0x8] sm:$0xff]
        %v357 = vld [vmem:[%s2] sm:$0x1]
        %v359 = vlaneseq
        %v360 = vshrl.u32 %v359, 7
        %v361 = vsub.s32 0, %v360
        %v362 = vrot.slane %v357, %v361
        %vm364 = vcmask 130048
        %v366 = vsel %vm364, %v351, 0
        %v369 = vsel %vm364, %v352, 0
        %v372 = vsel %vm364, %v353, 0
        %v375 = vsel %vm364, %v354, 0
        %377 = vmatprep.subr.mxu0 0.0
        %378 = vmatpush1.msra.mxu0 %v355
        %379 = vmatprep.subr.mxu0 0.0
        %380 = vmatpush1.msra.mxu0 %v356
        %381 = vmatprep.subr.mxu0 0.0
        %382 = vmatpush1.msra.mxu0 0.0
        %383 = vmatprep.subr.mxu0 0.0
        %384 = vmatpush1.msra.mxu0 0.0
        %385 = vmatprep.subr.mxu0 0.0
        %386 = vmatpush1.msra.mxu0 0.0
        %387 = vmatprep.subr.mxu0 0.0
        %388 = vmatpush1.msra.mxu0 0.0
        %389 = vmatprep.subr.mxu0 0.0
        %390 = vmatpush1.msra.mxu0 0.0
        %391 = vmatprep.subr.mxu0 0.0
        %392 = vmatpush1.msra.mxu0 0.0
        %393 = vmatprep.subr.mxu0 0.0
        %394 = vmatpush1.msra.mxu0 0.0
        %395 = vmatprep.subr.mxu0 0.0
        %396 = vmatpush1.msra.mxu0 0.0
        %397 = vmatprep.subr.mxu0 0.0
        %398 = vmatpush1.msra.mxu0 0.0
        %399 = vmatprep.subr.mxu0 0.0
        %400 = vmatpush1.msra.mxu0 0.0
        %401 = vmatprep.subr.mxu0 0.0
        %402 = vmatpush1.msra.mxu0 0.0
        %403 = vmatprep.subr.mxu0 0.0
        %404 = vmatpush1.msra.mxu0 0.0
        %405 = vmatprep.subr.mxu0 0.0
        %406 = vmatpush1.msra.mxu0 0.0
        %407 = vmatprep.subr.mxu0 0.0
        %408 = vmatpush1.msra.mxu0 0.0
        %409 = vmatprep.subr.mxu0 0.0
        %410 = vmatpush1.msra.mxu0 0.0
        %411 = vmatprep.subr.mxu0 0.0
        %412 = vmatpush1.msra.mxu0 0.0
        %413 = vmatprep.subr.mxu0 0.0
        %414 = vmatpush1.msra.mxu0 0.0
        %415 = vmatprep.subr.mxu0 0.0
        %416 = vmatpush1.msra.mxu0 0.0
        %417 = vmatprep.subr.mxu0 0.0
        %418 = vmatpush1.msra.mxu0 0.0
        %419 = vmatprep.subr.mxu0 0.0
        %420 = vmatpush1.msra.mxu0 0.0
        %421 = vmatprep.subr.mxu0 0.0
        %422 = vmatpush1.msra.mxu0 0.0
        %423 = vmatprep.subr.mxu0 0.0
        %424 = vmatpush1.msra.mxu0 0.0
        %425 = vmatprep.subr.mxu0 0.0
        %426 = vmatpush1.msra.mxu0 0.0
        %427 = vmatprep.subr.mxu0 0.0
        %428 = vmatpush1.msra.mxu0 0.0
        %429 = vmatprep.subr.mxu0 0.0
        %430 = vmatpush1.msra.mxu0 0.0
        %431 = vmatprep.subr.mxu0 0.0
        %432 = vmatpush1.msra.mxu0 0.0
        %433 = vmatprep.subr.mxu0 0.0
        %434 = vmatpush1.msra.mxu0 0.0
        %435 = vmatprep.subr.mxu0 0.0
        %436 = vmatpush1.msra.mxu0 0.0
        %437 = vmatprep.subr.mxu0 0.0
        %438 = vmatpush1.msra.mxu0 0.0
        %439 = vmatprep.subr.mxu0 0.0
        %440 = vmatpush1.msra.mxu0 0.0
        %441 = vmatprep.mubr.f32.mxu0 0.0
        %442 = vmatmul.mubr.f32.gmra.mrb[0].mxu0 %v366
        %v443 = vpop.f32.mrb[0].mxu0
        %v444 = vadd.f32 %v362, %v443
        %v445 = vpop.f32.mrb[0].mxu0
        %446 = vmatprep.mubr.f32.mxu0 0.0
        %447 = vmatmul.mubr.f32.gmra.mrb[0].mxu0 %v369
        %v448 = vpop.f32.mrb[0].mxu0
        %v449 = vadd.f32 %v362, %v448
        %v450 = vpop.f32.mrb[0].mxu0
        %451 = vmatprep.mubr.f32.mxu0 0.0
        %452 = vmatmul.mubr.f32.gmra.mrb[0].mxu0 %v372
        %v453 = vpop.f32.mrb[0].mxu0
        %v454 = vadd.f32 %v362, %v453
        %v455 = vpop.f32.mrb[0].mxu0
        %456 = vmatprep.mubr.f32.mxu0 0.0
        %457 = vmatmul.mubr.f32.gmra.mrb[0].mxu0 %v375
        %v458 = vpop.f32.mrb[0].mxu0
        %v459 = vadd.f32 %v362, %v458
        %v460 = vpop.f32.mrb[0].mxu0
        %461 = vdwg.mxu0
        %v462 = vmul.f32 %v444, 0.01
        %v463 = vmul.f32 %v449, 0.01
        %v464 = vmul.f32 %v454, 0.01
        %v465 = vmul.f32 %v459, 0.01
        %v466 = vmax.f32 %v444, %v462
        %v467 = vmax.f32 %v449, %v463
        %v468 = vmax.f32 %v454, %v464
        %v469 = vmax.f32 %v459, %v465
        %v470 = vld [vmem:[%s3] sm:$0xff]
        %v471 = vld [vmem:[%s3 + $0x8] sm:$0xff]
        %v472 = vld [vmem:[%s3 + $0x10] sm:$0xff]
        %v473 = vld [vmem:[%s3 + $0x18] sm:$0xff]
        %v474 = vld [vmem:[%s3 + $0x20] sm:$0xff]
        %v475 = vld [vmem:[%s3 + $0x28] sm:$0xff]
        %v476 = vld [vmem:[%s3 + $0x30] sm:$0xff]
        %v477 = vld [vmem:[%s3 + $0x38] sm:$0xff]
        %v478 = vld [vmem:[%s3 + $0x40] sm:$0xff]
        %v479 = vld [vmem:[%s3 + $0x48] sm:$0xff]
        %v480 = vld [vmem:[%s3 + $0x50] sm:$0xff]
        %v481 = vld [vmem:[%s3 + $0x58] sm:$0xff]
        %v482 = vld [vmem:[%s3 + $0x60] sm:$0xff]
        %v483 = vld [vmem:[%s3 + $0x68] sm:$0xff]
        %v484 = vld [vmem:[%s3 + $0x70] sm:$0xff]
        %v485 = vld [vmem:[%s3 + $0x78] sm:$0xff]
        %v486 = vld [vmem:[%s4] sm:$0x1]
        %v488 = vlaneseq
        %v489 = vshrl.u32 %v488, 7
        %v490 = vsub.s32 0, %v489
        %v491 = vrot.slane %v486, %v490
        %493 = vmatprep.subr.mxu0 0.0
        %494 = vmatpush1.msra.mxu0 %v470
        %495 = vmatprep.subr.mxu0 0.0
        %496 = vmatpush1.msra.mxu0 %v471
        %497 = vmatprep.subr.mxu0 0.0
        %498 = vmatpush1.msra.mxu0 %v472
        %499 = vmatprep.subr.mxu0 0.0
        %500 = vmatpush1.msra.mxu0 %v473
        %501 = vmatprep.subr.mxu0 0.0
        %502 = vmatpush1.msra.mxu0 %v474
        %503 = vmatprep.subr.mxu0 0.0
        %504 = vmatpush1.msra.mxu0 %v475
        %505 = vmatprep.subr.mxu0 0.0
        %506 = vmatpush1.msra.mxu0 %v476
        %507 = vmatprep.subr.mxu0 0.0
        %508 = vmatpush1.msra.mxu0 %v477
        %509 = vmatprep.subr.mxu0 0.0
        %510 = vmatpush1.msra.mxu0 %v478
        %511 = vmatprep.subr.mxu0 0.0
        %512 = vmatpush1.msra.mxu0 %v479
        %513 = vmatprep.subr.mxu0 0.0
        %514 = vmatpush1.msra.mxu0 %v480
        %515 = vmatprep.subr.mxu0 0.0
        %516 = vmatpush1.msra.mxu0 %v481
        %517 = vmatprep.subr.mxu0 0.0
        %518 = vmatpush1.msra.mxu0 %v482
        %519 = vmatprep.subr.mxu0 0.0
        %520 = vmatpush1.msra.mxu0 %v483
        %521 = vmatprep.subr.mxu0 0.0
        %522 = vmatpush1.msra.mxu0 %v484
        %523 = vmatprep.subr.mxu0 0.0
        %524 = vmatpush1.msra.mxu0 %v485
        %525 = vmatprep.subr.mxu0 0.0
        %526 = vmatpush1.msra.mxu0 0.0
        %527 = vmatprep.subr.mxu0 0.0
        %528 = vmatpush1.msra.mxu0 0.0
        %529 = vmatprep.subr.mxu0 0.0
        %530 = vmatpush1.msra.mxu0 0.0
        %531 = vmatprep.subr.mxu0 0.0
        %532 = vmatpush1.msra.mxu0 0.0
        %533 = vmatprep.subr.mxu0 0.0
        %534 = vmatpush1.msra.mxu0 0.0
        %535 = vmatprep.subr.mxu0 0.0
        %536 = vmatpush1.msra.mxu0 0.0
        %537 = vmatprep.subr.mxu0 0.0
        %538 = vmatpush1.msra.mxu0 0.0
        %539 = vmatprep.subr.mxu0 0.0
        %540 = vmatpush1.msra.mxu0 0.0
        %541 = vmatprep.subr.mxu0 0.0
        %542 = vmatpush1.msra.mxu0 0.0
        %543 = vmatprep.subr.mxu0 0.0
        %544 = vmatpush1.msra.mxu0 0.0
        %545 = vmatprep.subr.mxu0 0.0
        %546 = vmatpush1.msra.mxu0 0.0
        %547 = vmatprep.subr.mxu0 0.0
        %548 = vmatpush1.msra.mxu0 0.0
        %549 = vmatprep.subr.mxu0 0.0
        %550 = vmatpush1.msra.mxu0 0.0
        %551 = vmatprep.subr.mxu0 0.0
        %552 = vmatpush1.msra.mxu0 0.0
        %553 = vmatprep.subr.mxu0 0.0
        %554 = vmatpush1.msra.mxu0 0.0
        %555 = vmatprep.subr.mxu0 0.0
        %556 = vmatpush1.msra.mxu0 0.0
        %557 = vmatprep.mubr.f32.mxu0 0.0
        %558 = vmatmul.mubr.f32.gmra.mrb[0].mxu0 %v466
        %v559 = vpop.f32.mrb[0].mxu0
        %v560 = vadd.f32 %v491, %v559
        %v561 = vpop.f32.mrb[0].mxu0
        %562 = vmatprep.mubr.f32.mxu0 0.0
        %563 = vmatmul.mubr.f32.gmra.mrb[0].mxu0 %v467
        %v564 = vpop.f32.mrb[0].mxu0
        %v565 = vadd.f32 %v491, %v564
        %v566 = vpop.f32.mrb[0].mxu0
        %567 = vmatprep.mubr.f32.mxu0 0.0
        %568 = vmatmul.mubr.f32.gmra.mrb[0].mxu0 %v468
        %v569 = vpop.f32.mrb[0].mxu0
        %v570 = vadd.f32 %v491, %v569
        %v571 = vpop.f32.mrb[0].mxu0
        %572 = vmatprep.mubr.f32.mxu0 0.0
        %573 = vmatmul.mubr.f32.gmra.mrb[0].mxu0 %v469
        %v574 = vpop.f32.mrb[0].mxu0
        %v575 = vadd.f32 %v491, %v574
        %v576 = vpop.f32.mrb[0].mxu0
        %577 = vdwg.mxu0
        %v578 = vmul.f32 %v560, 0.01
        %v579 = vmul.f32 %v565, 0.01
        %v580 = vmul.f32 %v570, 0.01
        %v581 = vmul.f32 %v575, 0.01
        %v582 = vmax.f32 %v560, %v578
        %v583 = vmax.f32 %v565, %v579
        %v584 = vmax.f32 %v570, %v580
        %v585 = vmax.f32 %v575, %v581
        %v586 = vld [vmem:[#allocation2] sm:$0xff]
        %v587 = vld [vmem:[#allocation2 + $0x8] sm:$0xff]
        %v588 = vld [vmem:[#allocation2 + $0x10] sm:$0xff]
        %v589 = vld [vmem:[#allocation2 + $0x18] sm:$0xff]
        %v590 = vld [vmem:[#allocation2 + $0x20] sm:$0xff]
        %v591 = vld [vmem:[#allocation2 + $0x28] sm:$0xff]
        %v592 = vld [vmem:[#allocation2 + $0x30] sm:$0xff]
        %v593 = vld [vmem:[#allocation2 + $0x38] sm:$0xff]
        %v594 = vld [vmem:[#allocation2 + $0x40] sm:$0xff]
        %v595 = vld [vmem:[#allocation2 + $0x48] sm:$0xff]
        %v596 = vld [vmem:[#allocation2 + $0x50] sm:$0xff]
        %v597 = vld [vmem:[#allocation2 + $0x58] sm:$0xff]
        %v598 = vld [vmem:[#allocation2 + $0x60] sm:$0xff]
        %v599 = vld [vmem:[#allocation2 + $0x68] sm:$0xff]
        %v600 = vld [vmem:[#allocation2 + $0x70] sm:$0xff]
        %v601 = vld [vmem:[#allocation2 + $0x78] sm:$0xff]
        %v602 = vld [vmem:[%s6] sm:$0x1]
        %v604 = vlaneseq
        %v605 = vshrl.u32 %v604, 7
        %v606 = vsub.s32 0, %v605
        %v607 = vrot.slane %v602, %v606
        %609 = vmatprep.subr.mxu0 0.0
        %610 = vmatpush1.msra.mxu0 %v586
        %611 = vmatprep.subr.mxu0 0.0
        %612 = vmatpush1.msra.mxu0 %v587
        %613 = vmatprep.subr.mxu0 0.0
        %614 = vmatpush1.msra.mxu0 %v588
        %615 = vmatprep.subr.mxu0 0.0
        %616 = vmatpush1.msra.mxu0 %v589
        %617 = vmatprep.subr.mxu0 0.0
        %618 = vmatpush1.msra.mxu0 %v590
        %619 = vmatprep.subr.mxu0 0.0
        %620 = vmatpush1.msra.mxu0 %v591
        %621 = vmatprep.subr.mxu0 0.0
        %622 = vmatpush1.msra.mxu0 %v592
        %623 = vmatprep.subr.mxu0 0.0
        %624 = vmatpush1.msra.mxu0 %v593
        %625 = vmatprep.subr.mxu0 0.0
        %626 = vmatpush1.msra.mxu0 %v594
        %627 = vmatprep.subr.mxu0 0.0
        %628 = vmatpush1.msra.mxu0 %v595
        %629 = vmatprep.subr.mxu0 0.0
        %630 = vmatpush1.msra.mxu0 %v596
        %631 = vmatprep.subr.mxu0 0.0
        %632 = vmatpush1.msra.mxu0 %v597
        %633 = vmatprep.subr.mxu0 0.0
        %634 = vmatpush1.msra.mxu0 %v598
        %635 = vmatprep.subr.mxu0 0.0
        %636 = vmatpush1.msra.mxu0 %v599
        %637 = vmatprep.subr.mxu0 0.0
        %638 = vmatpush1.msra.mxu0 %v600
        %639 = vmatprep.subr.mxu0 0.0
        %640 = vmatpush1.msra.mxu0 %v601
        %641 = vmatprep.subr.mxu0 0.0
        %642 = vmatpush1.msra.mxu0 0.0
        %643 = vmatprep.subr.mxu0 0.0
        %644 = vmatpush1.msra.mxu0 0.0
        %645 = vmatprep.subr.mxu0 0.0
        %646 = vmatpush1.msra.mxu0 0.0
        %647 = vmatprep.subr.mxu0 0.0
        %648 = vmatpush1.msra.mxu0 0.0
        %649 = vmatprep.subr.mxu0 0.0
        %650 = vmatpush1.msra.mxu0 0.0
        %651 = vmatprep.subr.mxu0 0.0
        %652 = vmatpush1.msra.mxu0 0.0
        %653 = vmatprep.subr.mxu0 0.0
        %654 = vmatpush1.msra.mxu0 0.0
        %655 = vmatprep.subr.mxu0 0.0
        %656 = vmatpush1.msra.mxu0 0.0
        %657 = vmatprep.subr.mxu0 0.0
        %658 = vmatpush1.msra.mxu0 0.0
        %659 = vmatprep.subr.mxu0 0.0
        %660 = vmatpush1.msra.mxu0 0.0
        %661 = vmatprep.subr.mxu0 0.0
        %662 = vmatpush1.msra.mxu0 0.0
        %663 = vmatprep.subr.mxu0 0.0
        %664 = vmatpush1.msra.mxu0 0.0
        %665 = vmatprep.subr.mxu0 0.0
        %666 = vmatpush1.msra.mxu0 0.0
        %667 = vmatprep.subr.mxu0 0.0
        %668 = vmatpush1.msra.mxu0 0.0
        %669 = vmatprep.subr.mxu0 0.0
        %670 = vmatpush1.msra.mxu0 0.0
        %671 = vmatprep.subr.mxu0 0.0
        %672 = vmatpush1.msra.mxu0 0.0
        %673 = vmatprep.mubr.f32.mxu0 0.0
        %674 = vmatmul.mubr.f32.gmra.mrb[0].mxu0 %v582
        %v675 = vpop.f32.mrb[0].mxu0
        %v676 = vadd.f32 %v607, %v675
        %v677 = vpop.f32.mrb[0].mxu0
        %678 = vmatprep.mubr.f32.mxu0 0.0
        %679 = vmatmul.mubr.f32.gmra.mrb[0].mxu0 %v583
        %v680 = vpop.f32.mrb[0].mxu0
        %v681 = vadd.f32 %v607, %v680
        %v682 = vpop.f32.mrb[0].mxu0
        %683 = vmatprep.mubr.f32.mxu0 0.0
        %684 = vmatmul.mubr.f32.gmra.mrb[0].mxu0 %v584
        %v685 = vpop.f32.mrb[0].mxu0
        %v686 = vadd.f32 %v607, %v685
        %v687 = vpop.f32.mrb[0].mxu0
        %688 = vmatprep.mubr.f32.mxu0 0.0
        %689 = vmatmul.mubr.f32.gmra.mrb[0].mxu0 %v585
        %v690 = vpop.f32.mrb[0].mxu0
        %v691 = vadd.f32 %v607, %v690
        %v692 = vpop.f32.mrb[0].mxu0
        %693 = vdwg.mxu0
        %v694 = vmul.f32 %v676, 0.01
        %v695 = vmul.f32 %v681, 0.01
        %v696 = vmul.f32 %v686, 0.01
        %v697 = vmul.f32 %v691, 0.01
        %v698 = vmax.f32 %v676, %v694
        %v699 = vmax.f32 %v681, %v695
        %v700 = vmax.f32 %v686, %v696
        %v701 = vmax.f32 %v691, %v697
        %v702 = vld [vmem:[%s7] sm:$0xff]
        %v703 = vld [vmem:[%s7 + $0x8] sm:$0xff]
        %v704 = vld [vmem:[%s7 + $0x10] sm:$0xff]
        %v705 = vld [vmem:[%s7 + $0x18] sm:$0xff]
        %v706 = vld [vmem:[%s7 + $0x20] sm:$0xff]
        %v707 = vld [vmem:[%s7 + $0x28] sm:$0xff]
        %v708 = vld [vmem:[%s7 + $0x30] sm:$0xff]
        %v709 = vld [vmem:[%s7 + $0x38] sm:$0xff]
        %v710 = vld [vmem:[%s7 + $0x40] sm:$0xff]
        %v711 = vld [vmem:[%s7 + $0x48] sm:$0xff]
        %v712 = vld [vmem:[%s7 + $0x50] sm:$0xff]
        %v713 = vld [vmem:[%s7 + $0x58] sm:$0xff]
        %v714 = vld [vmem:[%s7 + $0x60] sm:$0xff]
        %v715 = vld [vmem:[%s7 + $0x68] sm:$0xff]
        %v716 = vld [vmem:[%s7 + $0x70] sm:$0xff]
        %v717 = vld [vmem:[%s7 + $0x78] sm:$0xff]
        %v718 = vld [vmem:[%s8] sm:$0x1]
        %v720 = vlaneseq
        %v721 = vshrl.u32 %v720, 7
        %v722 = vsub.s32 0, %v721
        %v723 = vrot.slane %v718, %v722
        %725 = vmatprep.subr.mxu0 0.0
        %726 = vmatpush1.msra.mxu0 %v702
        %727 = vmatprep.subr.mxu0 0.0
        %728 = vmatpush1.msra.mxu0 %v703
        %729 = vmatprep.subr.mxu0 0.0
        %730 = vmatpush1.msra.mxu0 %v704
        %731 = vmatprep.subr.mxu0 0.0
        %732 = vmatpush1.msra.mxu0 %v705
        %733 = vmatprep.subr.mxu0 0.0
        %734 = vmatpush1.msra.mxu0 %v706
        %735 = vmatprep.subr.mxu0 0.0
        %736 = vmatpush1.msra.mxu0 %v707
        %737 = vmatprep.subr.mxu0 0.0
        %738 = vmatpush1.msra.mxu0 %v708
        %739 = vmatprep.subr.mxu0 0.0
        %740 = vmatpush1.msra.mxu0 %v709
        %741 = vmatprep.subr.mxu0 0.0
        %742 = vmatpush1.msra.mxu0 %v710
        %743 = vmatprep.subr.mxu0 0.0
        %744 = vmatpush1.msra.mxu0 %v711
        %745 = vmatprep.subr.mxu0 0.0
        %746 = vmatpush1.msra.mxu0 %v712
        %747 = vmatprep.subr.mxu0 0.0
        %748 = vmatpush1.msra.mxu0 %v713
        %749 = vmatprep.subr.mxu0 0.0
        %750 = vmatpush1.msra.mxu0 %v714
        %751 = vmatprep.subr.mxu0 0.0
        %752 = vmatpush1.msra.mxu0 %v715
        %753 = vmatprep.subr.mxu0 0.0
        %754 = vmatpush1.msra.mxu0 %v716
        %755 = vmatprep.subr.mxu0 0.0
        %756 = vmatpush1.msra.mxu0 %v717
        %757 = vmatprep.subr.mxu0 0.0
        %758 = vmatpush1.msra.mxu0 0.0
        %759 = vmatprep.subr.mxu0 0.0
        %760 = vmatpush1.msra.mxu0 0.0
        %761 = vmatprep.subr.mxu0 0.0
        %762 = vmatpush1.msra.mxu0 0.0
        %763 = vmatprep.subr.mxu0 0.0
        %764 = vmatpush1.msra.mxu0 0.0
        %765 = vmatprep.subr.mxu0 0.0
        %766 = vmatpush1.msra.mxu0 0.0
        %767 = vmatprep.subr.mxu0 0.0
        %768 = vmatpush1.msra.mxu0 0.0
        %769 = vmatprep.subr.mxu0 0.0
        %770 = vmatpush1.msra.mxu0 0.0
        %771 = vmatprep.subr.mxu0 0.0
        %772 = vmatpush1.msra.mxu0 0.0
        %773 = vmatprep.subr.mxu0 0.0
        %774 = vmatpush1.msra.mxu0 0.0
        %775 = vmatprep.subr.mxu0 0.0
        %776 = vmatpush1.msra.mxu0 0.0
        %777 = vmatprep.subr.mxu0 0.0
        %778 = vmatpush1.msra.mxu0 0.0
        %779 = vmatprep.subr.mxu0 0.0
        %780 = vmatpush1.msra.mxu0 0.0
        %781 = vmatprep.subr.mxu0 0.0
        %782 = vmatpush1.msra.mxu0 0.0
        %783 = vmatprep.subr.mxu0 0.0
        %784 = vmatpush1.msra.mxu0 0.0
        %785 = vmatprep.subr.mxu0 0.0
        %786 = vmatpush1.msra.mxu0 0.0
        %787 = vmatprep.subr.mxu0 0.0
        %788 = vmatpush1.msra.mxu0 0.0
        %789 = vmatprep.mubr.f32.mxu0 0.0
        %790 = vmatmul.mubr.f32.gmra.mrb[0].mxu0 %v698
        %v791 = vpop.f32.mrb[0].mxu0
        %v792 = vadd.f32 %v723, %v791
        %v793 = vpop.f32.mrb[0].mxu0
        %794 = vmatprep.mubr.f32.mxu0 0.0
        %795 = vmatmul.mubr.f32.gmra.mrb[0].mxu0 %v699
        %v796 = vpop.f32.mrb[0].mxu0
        %v797 = vadd.f32 %v723, %v796
        %v798 = vpop.f32.mrb[0].mxu0
        %799 = vmatprep.mubr.f32.mxu0 0.0
        %800 = vmatmul.mubr.f32.gmra.mrb[0].mxu0 %v700
        %v801 = vpop.f32.mrb[0].mxu0
        %v802 = vadd.f32 %v723, %v801
        %v803 = vpop.f32.mrb[0].mxu0
        %804 = vmatprep.mubr.f32.mxu0 0.0
        %805 = vmatmul.mubr.f32.gmra.mrb[0].mxu0 %v701
        %v806 = vpop.f32.mrb[0].mxu0
        %v807 = vadd.f32 %v723, %v806
        %v808 = vpop.f32.mrb[0].mxu0
        %809 = vdwg.mxu0
        %vm810 = vcmask 31744
        %811 = vst.msk [vmem:[%s349] sm:$0xff] %vm810, %v792
        %812 = vst.msk [vmem:[%s349 + $0x8] sm:$0xff] %vm810, %v797
        %813 = vst.msk [vmem:[%s349 + $0x10] sm:$0xff] %vm810, %v802
        %814 = vst.msk [vmem:[%s349 + $0x18] sm:$0xff] %vm810, %v807
        %s815 = smul.u32 4, %s21
        %p816 = scmp.lt.s32.totalorder %s815, 7
        %s817 = scalar_select %p816, %s815, 7
        %s818 = smul.addr %s817, 8
        %s819 = scalar_lea.vmem %s9, %s818
        // Predicated region
        $region61: #{tpu_custom_call.1} parent=55 // pred_check
          %p820 = pneg %p233
        $region62: #{tpu_custom_call.1} parent=55 // pred_check_branch
          %822 = sbr.rel (%p820) target = $region64
        $region63: #{tpu_custom_call.1} parent=55 // pred_region
          %s823 = smul.u32 4, %s21
        $region64: #{tpu_custom_call.1} parent=55 // pred_fallthru
          _
      $region56: #{tpu_custom_call.1} parent=5 // pred_fallthru
        _
      %p824 = scmp.le.s32.totalorder 2, %s16
      // Predicated region
      $region65: #{tpu_custom_call.1} parent=5 // pred_check
        %p825 = pneg %p824
      $region66: #{tpu_custom_call.1} parent=5 // pred_check_branch
        %827 = sbr.rel (%p825) target = $region68
      $region67: #{tpu_custom_call.1} parent=5 // pred_region
        %s828 = ssub.s32 %s16, 2
        // Predicated region
        $region69: #{tpu_custom_call.1} parent=67 // pred_check
          %p829 = pneg %p239
        $region70: #{tpu_custom_call.1} parent=67 // pred_check_branch
          %831 = sbr.rel (%p829) target = $region72
        $region71: #{tpu_custom_call.1} parent=67 // pred_region
          %s832 = smul.u32 4, %s22
          %p833 = scmp.lt.s32.totalorder %s832, 7
          %s834 = scalar_select %p833, %s832, 7
          %s835 = smul.addr %s834, 8
          %s836 = scalar_lea.vmem %s9, %s835
        $region72: #{tpu_custom_call.1} parent=67 // pred_fallthru
          _
      $region68: #{tpu_custom_call.1} parent=5 // pred_fallthru
        _
    $region6: #{tpu_custom_call.1} parent=1 // loop_footer
      %s20 = sadd.s32 1, %s16
    $region7: #{tpu_custom_call.1} parent=1 // loop_footer_branch
      %15 = sbr.rel target = $region3
    $region8: #{tpu_custom_call.1} parent=1 // loop_exit
      _
    %837 = vsyncpa [#allocation3], 1
    %s838 = scalar_lea.sflag [#allocation3], 1
    %839 = vsyncpa %s838, 1

</llo_original>
